<compile_context>
chip_gen: v6e
topology: v6e:2x2x1
jax: 0.10.0
libtpu: 0.0.40
codegen_flags: <defaults>
</compile_context>

<pallas_src>
import functools

import jax
import jax.numpy as jnp
from jax.experimental import pallas as pl
from jax.experimental.pallas import tpu as pltpu

# BT.601 luma coefficients (rgb2ycbcr Y channel, input range [0,1]).
_W_R = 65.481 / 255.0
_W_G = 128.553 / 255.0
_W_B = 24.966 / 255.0
_BIAS = 16.0 / 255.0  # cancels in the difference; kept for the reference impl

_LANES = 128


def _round_up(v: int, m: int) -> int:
    return ((v + m - 1) // m) * m


def _pick_max_ts() -> int:
    """Tile rows per grid step, chosen per TPU generation.

    Input double-buffering costs 2 inputs x 2 buffers x 3*TS*128*4 B:
      TS=1024 ->  6 MiB (fits v5e's 16 MiB default scoped VMEM)
      TS=2048 -> 12 MiB (fits v6e/v7x's 32 MiB default scoped VMEM)
    """
    try:
        kind = jax.devices()[0].device_kind.lower()
    except Exception:
        return 1024
    if "v5" in kind or "v4" in kind or "v3" in kind or "v2" in kind:
        return 1024
    return 2048


def _luma_partial_kernel(x_ref, y_ref, out_ref, *, criterion, eps, hw, ts,
                         need_mask, row_mask_only):
    """x_ref/y_ref: (3, TS, 128) VMEM tiles.  out_ref: (8, 128) per-step partial sum."""
    # Fused weighted RGB difference on dense (TS, 128) slabs; the +16/255 bias cancels.
    diff = (
        (x_ref[0].astype(jnp.float32) - y_ref[0].astype(jnp.float32)) * _W_R
        + (x_ref[1].astype(jnp.float32) - y_ref[1].astype(jnp.float32)) * _W_G
        + (x_ref[2].astype(jnp.float32) - y_ref[2].astype(jnp.float32)) * _W_B
    )  # (TS, 128)

    if criterion == "l1":
        per_elem = jnp.abs(diff)
    elif criterion == "l2":
        per_elem = diff * diff
    elif criterion == "charbonnier":
        per_elem = jnp.sqrt(diff * diff + eps)
    else:
        raise NotImplementedError(f"{criterion} criterion has not been supported.")

    def _reduce(v):
        # Reduce the tile to one (8, 128) vreg with pure VALU adds (no cross-lane XLU
        # work in the hot loop); the final cross-lane reduce happens once, in JAX.
        return v.reshape(ts // 8, 8, _LANES).sum(axis=0)

    if not need_mask:
        out_ref[...] = _reduce(per_elem)
        return

    # Only the LAST tile along the spatial grid axis can contain padded / out-of-bounds
    # elements; keep every other tile mask-free (iota + select stays off the hot path).
    j = pl.program_id(1)
    last = pl.num_programs(1) - 1

    @pl.when(j != last)
    def _():
        out_ref[...] = _reduce(per_elem)

    @pl.when(j == last)
    def _():
        row = jax.lax.broadcasted_iota(jnp.int32, (ts, _LANES), 0)
        if row_mask_only:
            # hw is a multiple of 128 -> validity boundary is a whole-row boundary.
            keep = (j * ts + row) < (hw // _LANES)
        else:
            col = jax.lax.broadcasted_iota(jnp.int32, (ts, _LANES), 1)
            flat = j * (ts * _LANES) + row * _LANES + col
            keep = flat < hw
        # Must be a select (not a multiply): OOB/ragged data is undefined (possibly NaN),
        # and padded zeros would contribute sqrt(eps) each under Charbonnier.
        out_ref[...] = _reduce(jnp.where(keep, per_elem, 0.0))


class LumaLoss:
    """Pallas-TPU implementation of traiNNer LumaLoss.forward."""

    def __init__(self, loss_weight: float, criterion: str = "l1") -> None:
        if criterion not in ("l1", "l2", "charbonnier"):
            raise NotImplementedError(f"{criterion} criterion has not been supported.")
        # Kept for parity with the module signature; the source forward() never applies it.
        self.loss_weight = loss_weight
        self.criterion_type = criterion

    def __call__(self, x: jax.Array, y: jax.Array) -> jax.Array:
        return self.forward(x, y)

    def forward(self, x: jax.Array, y: jax.Array) -> jax.Array:
        n, c, h, w = x.shape
        assert c == 3, "LumaLoss expects RGB (C=3) NCHW input"
        hw = h * w

        # Tile geometry: rows of 128 lanes; pad only to a multiple of 8 rows (1024 elems),
        # NOT to a full tile — ragged last grid blocks are masked inside the kernel.
        rows_needed = pl.cdiv(hw, _LANES)
        padded_rows = _round_up(max(rows_needed, 8), 8)
        padded_hw = padded_rows * _LANES
        ts = min(_pick_max_ts(), padded_rows)          # multiple of 8 by construction
        num_tiles = pl.cdiv(padded_rows, ts)
        covered = num_tiles * ts * _LANES              # elements spanned by the grid
        need_mask = covered != hw
        row_mask_only = (hw % _LANES) == 0

        # Keep native dtype (bf16 preferred) into the kernel; the kernel upcasts per-tile.
        x2 = x.reshape(n, 3, hw)
        y2 = y.reshape(n, 3, hw)
        if padded_hw != hw:
            # Only hit when hw % 1024 != 0 (uncommon image sizes).
            pad = ((0, 0), (0, 0), (0, padded_hw - hw))
            x2 = jnp.pad(x2, pad)
            y2 = jnp.pad(y2, pad)
        x2 = x2.reshape(n, 3, padded_rows, _LANES)
        y2 = y2.reshape(n, 3, padded_rows, _LANES)

        kernel = functools.partial(
            _luma_partial_kernel,
            criterion=self.criterion_type,
            eps=1e-12,
            hw=hw,
            ts=ts,
            need_mask=need_mask,
            row_mask_only=row_mask_only,
        )

        # Give headroom for the 12 MiB of input double-buffers at TS=2048.
        vmem_limit = (48 << 20) if ts >= 2048 else None

        partials = pl.pallas_call(
            kernel,
            out_shape=jax.ShapeDtypeStruct((n, num_tiles, 8, _LANES), jnp.float32),
            grid_spec=pltpu.PrefetchScalarGridSpec(
                num_scalar_prefetch=0,
                grid=(n, num_tiles),
                in_specs=[
                    pl.BlockSpec((None, 3, ts, _LANES), lambda i, j: (i, 0, j, 0)),
                    pl.BlockSpec((None, 3, ts, _LANES), lambda i, j: (i, 0, j, 0)),
                ],
                out_specs=pl.BlockSpec(
                    (None, None, 8, _LANES), lambda i, j: (i, j, 0, 0)
                ),
            ),
            compiler_params=pltpu.CompilerParams(
                # No cross-step accumulator -> fully parallel grid (megacore on v7x).
                dimension_semantics=("parallel", "parallel"),
                vmem_limit_bytes=vmem_limit,
            ),
        )(x2, y2)

        # Final tree reduction + mean in plain JAX (tiny compared to input traffic).
        return jnp.sum(partials) / jnp.float32(n * hw)


def _reference_luma_loss(x, y, criterion="l1", eps=1e-12):
    def luma(img):
        return img[:, 0] * _W_R + img[:, 1] * _W_G + img[:, 2] * _W_B + _BIAS

    d = luma(x.astype(jnp.float32)) - luma(y.astype(jnp.float32))
    if criterion == "l1":
        return jnp.mean(jnp.abs(d))
    if criterion == "l2":
        return jnp.mean(d * d)
    return jnp.mean(jnp.sqrt(d * d + eps))


if __name__ == "__main__":
    key = jax.random.PRNGKey(0)
    kx, ky = jax.random.split(key)

    ok = True
    # (2,3,16,16): hw=256 -> padded + row-only mask path.
    # (1,3,24,24): hw=576 -> padded + flat (row+col) mask path.
    for shape in ((2, 3, 16, 16), (1, 3, 24, 24)):
        x = jax.random.uniform(kx, shape, dtype=jnp.float32)
        y = jax.random.uniform(ky, shape, dtype=jnp.float32)
        for crit in ("l1", "l2", "charbonnier"):
            loss_mod = LumaLoss(loss_weight=1.0, criterion=crit)
            out = jax.block_until_ready(loss_mod(x, y))
            ref = jax.block_until_ready(_reference_luma_loss(x, y, crit))
            if not jnp.allclose(out, ref, rtol=1e-5, atol=1e-6):
                ok = False
                print(f"mismatch for {shape} {crit}: pallas={out} ref={ref}")

    if ok:
        print("KERNEL_OK")
</pallas_src>

<mosaic_0001>
module attributes {stable_mosaic.version = 11 : i64} {
  func.func @_luma_partial_kernel(%arg0: i32, %arg1: i32, %arg2: memref<1x3x8x128xf32, #tpu.memory_space<vmem>>, %arg3: memref<1x3x8x128xf32, #tpu.memory_space<vmem>>, %arg4: memref<1x1x8x128xf32, #tpu.memory_space<vmem>>) attributes {dimension_semantics = [#tpu.dimension_semantics<parallel>, #tpu.dimension_semantics<parallel>], iteration_bounds = array<i64: 2, 1>, scalar_prefetch = 0 : i64, scratch_operands = 0 : i64, tpu.core_type = #tpu.core_type<tc>, window_params = [{transform_indices = @transform_0, window_bounds = array<i64: 1, 3, 8, 128>}, {transform_indices = @transform_1, window_bounds = array<i64: 1, 3, 8, 128>}, {transform_indices = @transform_2, window_bounds = array<i64: 1, 1, 8, 128>}]} {
    %c0 = arith.constant 0 : index
    %c0_0 = arith.constant 0 : index
    %c0_1 = arith.constant 0 : index
    %c0_2 = arith.constant 0 : index
    %0 = vector.load %arg2[%c0, %c0_0, %c0_1, %c0_2] : memref<1x3x8x128xf32, #tpu.memory_space<vmem>>, vector<1x1x8x128xf32>
    %1 = vector.shape_cast %0 : vector<1x1x8x128xf32> to vector<8x128xf32>
    %c0_3 = arith.constant 0 : index
    %c0_4 = arith.constant 0 : index
    %c0_5 = arith.constant 0 : index
    %c0_6 = arith.constant 0 : index
    %2 = vector.load %arg3[%c0_3, %c0_4, %c0_5, %c0_6] : memref<1x3x8x128xf32, #tpu.memory_space<vmem>>, vector<1x1x8x128xf32>
    %3 = vector.shape_cast %2 : vector<1x1x8x128xf32> to vector<8x128xf32>
    %4 = arith.subf %1, %3 : vector<8x128xf32>
    %cst = arith.constant 0.256788224 : f32
    %5 = vector.broadcast %cst : f32 to vector<8x128xf32>
    %6 = arith.mulf %4, %5 : vector<8x128xf32>
    %c0_7 = arith.constant 0 : index
    %c1 = arith.constant 1 : index
    %c0_8 = arith.constant 0 : index
    %c0_9 = arith.constant 0 : index
    %7 = vector.load %arg2[%c0_7, %c1, %c0_8, %c0_9] : memref<1x3x8x128xf32, #tpu.memory_space<vmem>>, vector<1x1x8x128xf32>
    %8 = vector.shape_cast %7 : vector<1x1x8x128xf32> to vector<8x128xf32>
    %c0_10 = arith.constant 0 : index
    %c1_11 = arith.constant 1 : index
    %c0_12 = arith.constant 0 : index
    %c0_13 = arith.constant 0 : index
    %9 = vector.load %arg3[%c0_10, %c1_11, %c0_12, %c0_13] : memref<1x3x8x128xf32, #tpu.memory_space<vmem>>, vector<1x1x8x128xf32>
    %10 = vector.shape_cast %9 : vector<1x1x8x128xf32> to vector<8x128xf32>
    %11 = arith.subf %8, %10 : vector<8x128xf32>
    %cst_14 = arith.constant 0.50412941 : f32
    %12 = vector.broadcast %cst_14 : f32 to vector<8x128xf32>
    %13 = arith.mulf %11, %12 : vector<8x128xf32>
    %14 = arith.addf %6, %13 : vector<8x128xf32>
    %c0_15 = arith.constant 0 : index
    %c2 = arith.constant 2 : index
    %c0_16 = arith.constant 0 : index
    %c0_17 = arith.constant 0 : index
    %15 = vector.load %arg2[%c0_15, %c2, %c0_16, %c0_17] : memref<1x3x8x128xf32, #tpu.memory_space<vmem>>, vector<1x1x8x128xf32>
    %16 = vector.shape_cast %15 : vector<1x1x8x128xf32> to vector<8x128xf32>
    %c0_18 = arith.constant 0 : index
    %c2_19 = arith.constant 2 : index
    %c0_20 = arith.constant 0 : index
    %c0_21 = arith.constant 0 : index
    %17 = vector.load %arg3[%c0_18, %c2_19, %c0_20, %c0_21] : memref<1x3x8x128xf32, #tpu.memory_space<vmem>>, vector<1x1x8x128xf32>
    %18 = vector.shape_cast %17 : vector<1x1x8x128xf32> to vector<8x128xf32>
    %19 = arith.subf %16, %18 : vector<8x128xf32>
    %cst_22 = arith.constant 0.0979058817 : f32
    %20 = vector.broadcast %cst_22 : f32 to vector<8x128xf32>
    %21 = arith.mulf %19, %20 : vector<8x128xf32>
    %22 = arith.addf %14, %21 : vector<8x128xf32>
    %23 = math.absf %22 : vector<8x128xf32>
    %c0_i32 = arith.constant 0 : i32
    %24 = arith.cmpi ne, %arg1, %c0_i32 : i32
    %25 = arith.extui %24 : i1 to i32
    %c0_i32_23 = arith.constant 0 : i32
    %26 = arith.cmpi ne, %25, %c0_i32_23 : i32
    scf.if %26 {
      %30 = vector.shape_cast %23 : vector<8x128xf32> to vector<1x8x128xf32>
      %cst_26 = arith.constant dense<0.000000e+00> : vector<8x128xf32>
      %31 = vector.multi_reduction <add>, %30, %cst_26 [0] : vector<1x8x128xf32> to vector<8x128xf32>
      %c0_27 = arith.constant 0 : index
      %c0_28 = arith.constant 0 : index
      %c0_29 = arith.constant 0 : index
      %c0_30 = arith.constant 0 : index
      %32 = vector.load %arg4[%c0_27, %c0_28, %c0_29, %c0_30] : memref<1x1x8x128xf32, #tpu.memory_space<vmem>>, vector<1x1x8x128xf32>
      %33 = vector.shape_cast %32 : vector<1x1x8x128xf32> to vector<8x128xf32>
      %34 = vector.shape_cast %31 : vector<8x128xf32> to vector<1x1x8x128xf32>
      tpu.vector_store %arg4[%c0_27, %c0_28, %c0_29, %c0_30], %34 {strides = array<i32>} : memref<1x1x8x128xf32, #tpu.memory_space<vmem>>, vector<1x1x8x128xf32>,
    } else {
    }
    %c0_i32_24 = arith.constant 0 : i32
    %27 = arith.cmpi eq, %arg1, %c0_i32_24 : i32
    %28 = arith.extui %27 : i1 to i32
    %c0_i32_25 = arith.constant 0 : i32
    %29 = arith.cmpi ne, %28, %c0_i32_25 : i32
    scf.if %29 {
      %30 = tpu.iota {dimensions = array<i32: 0>} : vector<8x128xi32>
      %c8_i32 = arith.constant 8 : i32
      %31 = arith.muli %arg1, %c8_i32 : i32
      %32 = vector.broadcast %31 : i32 to vector<8x128xi32>
      %33 = arith.addi %32, %30 : vector<8x128xi32>
      %c2_i32 = arith.constant 2 : i32
      %34 = vector.broadcast %c2_i32 : i32 to vector<8x128xi32>
      %35 = arith.cmpi slt, %33, %34 : vector<8x128xi32>
      %cst_26 = arith.constant 0.000000e+00 : f32
      %36 = vector.broadcast %cst_26 : f32 to vector<8x128xf32>
      %37 = arith.select %35, %23, %36 : vector<8x128xi1>, vector<8x128xf32>
      %38 = vector.shape_cast %37 : vector<8x128xf32> to vector<1x8x128xf32>
      %cst_27 = arith.constant dense<0.000000e+00> : vector<8x128xf32>
      %39 = vector.multi_reduction <add>, %38, %cst_27 [0] : vector<1x8x128xf32> to vector<8x128xf32>
      %c0_28 = arith.constant 0 : index
      %c0_29 = arith.constant 0 : index
      %c0_30 = arith.constant 0 : index
      %c0_31 = arith.constant 0 : index
      %40 = vector.load %arg4[%c0_28, %c0_29, %c0_30, %c0_31] : memref<1x1x8x128xf32, #tpu.memory_space<vmem>>, vector<1x1x8x128xf32>
      %41 = vector.shape_cast %40 : vector<1x1x8x128xf32> to vector<8x128xf32>
      %42 = vector.shape_cast %39 : vector<8x128xf32> to vector<1x1x8x128xf32>
      tpu.vector_store %arg4[%c0_28, %c0_29, %c0_30, %c0_31], %42 {strides = array<i32>} : memref<1x1x8x128xf32, #tpu.memory_space<vmem>>, vector<1x1x8x128xf32>,
    } else {
    }
    return
  }
  func.func @transform_0(%arg0: i32, %arg1: i32) -> (i32, i32, i32, i32) {
    %c0_i32 = arith.constant 0 : i32
    %c0_i32_0 = arith.constant 0 : i32
    %c0_i32_1 = arith.constant 0 : i32
    return %arg0, %c0_i32, %arg1, %c0_i32_0 : i32, i32, i32, i32
  }
  func.func @transform_1(%arg0: i32, %arg1: i32) -> (i32, i32, i32, i32) {
    %c0_i32 = arith.constant 0 : i32
    %c0_i32_0 = arith.constant 0 : i32
    %c0_i32_1 = arith.constant 0 : i32
    return %arg0, %c0_i32, %arg1, %c0_i32_0 : i32, i32, i32, i32
  }
  func.func @transform_2(%arg0: i32, %arg1: i32) -> (i32, i32, i32, i32) {
    %c0_i32 = arith.constant 0 : i32
    %c0_i32_0 = arith.constant 0 : i32
    %c0_i32_1 = arith.constant 0 : i32
    return %arg0, %arg1, %c0_i32, %c0_i32_0 : i32, i32, i32, i32
  }
}

</mosaic_0001>

<llo_original>
// kernel: tpu_custom_call.1
$region0: #{tpu_custom_call.1}
  #allocation0 [shape = 'u32[]', space=smem, size = 0x4, offset = 0x4, fixed_abs, tag = 'smem constant byte address 0x4 - core index']
  #allocation1 [shape = 'u32[144,128]{1,0:T(1,128)}', space=vmem, size = 0x12000, scoped, tag = 'internal scratch']
  %s0 = inlined_call_operand.hbm [shape: f32[2,3,8,128], index: 0, kind: input, shape index: {}]
  %s1 = inlined_call_operand.hbm [shape: f32[2,3,8,128], index: 1, kind: input, shape index: {}]
  %s2 = inlined_call_operand.hbm [shape: f32[2,1,8,128], index: 2, kind: output, shape index: {}]
  %s3 = sld [smem:[#allocation0]]
  $region57: #{tpu_custom_call.1} parent=0
    _
  %s5 = ssub.s32 1, %s3
  %s6 = scalar_select 0, %s5, %s3
  $region1: #{tpu_custom_call.1} parent=0
    #allocation2 [shape = 'u8[24576]{0}', space=vmem, size = 0x6000, scoped, tag = 'input window, operand 0']
    #allocation3 [shape = 's32[2]{0}', space=sflag, size = 0x8, scoped, tag = 'scoped memory for tpu_custom_call.1']
    #allocation4 [shape = 's32[2]{0}', space=sflag, size = 0x8, scoped, tag = 'scoped memory for tpu_custom_call.1']
    #allocation5 [shape = 'u8[24576]{0}', space=vmem, size = 0x6000, scoped, tag = 'input window, operand 1']
    #allocation6 [shape = 's32[2]{0}', space=sflag, size = 0x8, scoped, tag = 'scoped memory for tpu_custom_call.1']
    #allocation7 [shape = 'u8[8192]{0}', space=vmem, size = 0x2000, scoped, tag = 'output window, operand 0']
    %7 = vsyncpa [#allocation3], 0
    %s8 = scalar_lea.sflag [#allocation3], 1
    %9 = vsyncpa %s8, 0
    %10 = vsyncpa [#allocation6], 0
    %s11 = scalar_lea.sflag [#allocation6], 1
    %12 = vsyncpa %s11, 0
    %13 = vsyncpa [#allocation4], 0
    %s14 = scalar_lea.sflag [#allocation4], 1
    %15 = vsyncpa %s14, 0
    loop: start=0, step=1, limit=4
    $region2: #{tpu_custom_call.1} parent=1 // loop_pre_header
      _
    $region3: #{tpu_custom_call.1} parent=1 // loop_header
      %s17 = sphi 0, %s21
      %p18 = scmp.ge.s32.totalorder %s17, 4
      %s24 = sphi 0, %s36
      %s25 = sphi 0, %s32
      %s26 = sphi 0, %s24
      %s27 = sphi 0, %s25
      %s28 = sphi 0, %s26
      %s29 = sphi 0, %s27
      %s41 = sphi 0, %s43
      %s44 = sphi 0, %s41
      %s45 = sphi 0, %s44
      %s61 = sphi 0, %s45
      %s69 = sphi 0, %s71
      %s72 = sphi 0, %s69
      %s73 = sphi 0, %s72
      %s89 = sphi 0, %s73
      %s97 = sphi 0, %s99
      %s100 = sphi 0, %s97
      %s101 = sphi 0, %s100
      %s117 = sphi 0, %s101
    $region4: #{tpu_custom_call.1} parent=1 // loop_header_branch
      %20 = sbr.rel (%p18) target = $region8
    $region5: #{tpu_custom_call.1} parent=1 // loop_body
      %s22 = ssub.s32 %s17, 1
      %s23 = ssub.s32 %s17, 2
      %s30 = sadd.s32 1, %s25
      %p31 = scmp.ge.s32.totalorder %s30, 1
      %s32 = scalar_select %p31, 0, %s30
      %s33 = sadd.s32 1, %s24
      %s34 = scalar_select %p31, %s33, %s24
      %p35 = scmp.ge.s32.totalorder %s34, 2
      %s36 = scalar_select %p35, 0, %s34
      %s37 = ssub.s32 %s24, %s36
      %s38 = ssub.s32 %s25, %s32
      %s39 = sor.u32 %s37, %s38
      %p40 = scmp.eq.s32.totalorder %s39, 0
      %s42 = sadd.s32 %s41, 1
      %s43 = scalar_select %p40, %s41, %s42
      %p46 = pneg %p40
      %p47 = scmp.eq.s32.totalorder %s17, 1
      %p48 = por %p46, %p47
      %p49 = scmp.ne.s32.totalorder %s41, %s44
      %p50 = scmp.eq.s32.totalorder %s17, 0
      %p51 = por %p49, %p50
      %p52 = scmp.ne.s32.totalorder %s41, %s44
      %p53 = scmp.eq.s32.totalorder %s22, 1
      %p54 = por %p52, %p53
      %p55 = scmp.ne.s32.totalorder %s44, %s45
      %p56 = scmp.eq.s32.totalorder %s22, 0
      %p57 = por %p55, %p56
      %p58 = scmp.ne.s32.totalorder %s44, %s45
      %p59 = scmp.eq.s32.totalorder %s23, 1
      %p60 = por %p58, %p59
      %p62 = scmp.ne.s32.totalorder %s45, %s61
      %p63 = scmp.eq.s32.totalorder %s23, 0
      %p64 = por %p62, %p63
      %s65 = ssub.s32 %s24, %s36
      %s66 = ssub.s32 %s25, %s32
      %s67 = sor.u32 %s65, %s66
      %p68 = scmp.eq.s32.totalorder %s67, 0
      %s70 = sadd.s32 %s69, 1
      %s71 = scalar_select %p68, %s69, %s70
      %p74 = pneg %p68
      %p75 = scmp.eq.s32.totalorder %s17, 1
      %p76 = por %p74, %p75
      %p77 = scmp.ne.s32.totalorder %s69, %s72
      %p78 = scmp.eq.s32.totalorder %s17, 0
      %p79 = por %p77, %p78
      %p80 = scmp.ne.s32.totalorder %s69, %s72
      %p81 = scmp.eq.s32.totalorder %s22, 1
      %p82 = por %p80, %p81
      %p83 = scmp.ne.s32.totalorder %s72, %s73
      %p84 = scmp.eq.s32.totalorder %s22, 0
      %p85 = por %p83, %p84
      %p86 = scmp.ne.s32.totalorder %s72, %s73
      %p87 = scmp.eq.s32.totalorder %s23, 1
      %p88 = por %p86, %p87
      %p90 = scmp.ne.s32.totalorder %s73, %s89
      %p91 = scmp.eq.s32.totalorder %s23, 0
      %p92 = por %p90, %p91
      %s93 = ssub.s32 %s24, %s36
      %s94 = ssub.s32 %s25, %s32
      %s95 = sor.u32 %s93, %s94
      %p96 = scmp.eq.s32.totalorder %s95, 0
      %s98 = sadd.s32 %s97, 1
      %s99 = scalar_select %p96, %s97, %s98
      %p102 = pneg %p96
      %p103 = scmp.eq.s32.totalorder %s17, 1
      %p104 = por %p102, %p103
      %p105 = scmp.ne.s32.totalorder %s97, %s100
      %p106 = scmp.eq.s32.totalorder %s17, 0
      %p107 = por %p105, %p106
      %p108 = scmp.ne.s32.totalorder %s97, %s100
      %p109 = scmp.eq.s32.totalorder %s22, 1
      %p110 = por %p108, %p109
      %p111 = scmp.ne.s32.totalorder %s100, %s101
      %p112 = scmp.eq.s32.totalorder %s22, 0
      %p113 = por %p111, %p112
      %p114 = scmp.ne.s32.totalorder %s100, %s101
      %p115 = scmp.eq.s32.totalorder %s23, 1
      %p116 = por %p114, %p115
      %p118 = scmp.ne.s32.totalorder %s101, %s117
      %p119 = scmp.eq.s32.totalorder %s23, 0
      %p120 = por %p118, %p119
      %p121 = scmp.le.s32.totalorder 1, %s17
      %p122 = scmp.lt.s32.totalorder %s17, 3
      %p123 = pnand %p121, %p122
      %p124 = pneg %p123
      // Predicated region
      $region9: #{tpu_custom_call.1} parent=5 // pred_check
        _
      $region10: #{tpu_custom_call.1} parent=5 // pred_check_branch
        %126 = sbr.rel (%p123) target = $region12
      $region11: #{tpu_custom_call.1} parent=5 // pred_region
        %s127 = ssub.s32 %s17, 1
      $region12: #{tpu_custom_call.1} parent=5 // pred_fallthru
        _
      %p128 = scmp.lt.s32.totalorder %s17, 2
      // Predicated region
      $region13: #{tpu_custom_call.1} parent=5 // pred_check
        %p129 = pneg %p128
      $region14: #{tpu_custom_call.1} parent=5 // pred_check_branch
        %131 = sbr.rel (%p129) target = $region16
      $region15: #{tpu_custom_call.1} parent=5 // pred_region
        // Predicated region
        $region17: #{tpu_custom_call.1} parent=15 // pred_check
          %p132 = pneg %p51
        $region18: #{tpu_custom_call.1} parent=15 // pred_check_branch
          %134 = sbr.rel (%p132) target = $region20
        $region19: #{tpu_custom_call.1} parent=15 // pred_region
          %s135 = sand.u32 %s41, 1
          %s136 = scalar_lea.sflag [#allocation3], %s135
          %s137 = sand.u32 %s41, 1
          %s138 = smul.addr %s137, 24
          %s139 = scalar_lea.vmem [#allocation2], %s138
          %s141 = ssub.s32 384, 384
          %142 = vsyncadd %s136, %s141
          %s143 = smul.addr %s24, 3
          %s144 = sadd.s32 %s25, %s143
          %s145 = smul.addr %s144, 128
          %s146 = scalar_lea.hbm %s0, %s145
          %s147 = sshll.u32 %s139, 4
          %s148 = int_to_ptr.vmem [resolvable:$true] %s147
          %153 = dma.hbm_to_vmem [thread:$0]  %s146, 384, %s148, %s136, 128, 128, 8
        $region20: #{tpu_custom_call.1} parent=15 // pred_fallthru
          _
        // Predicated region
        $region21: #{tpu_custom_call.1} parent=15 // pred_check
          %p154 = pneg %p79
        $region22: #{tpu_custom_call.1} parent=15 // pred_check_branch
          %156 = sbr.rel (%p154) target = $region24
        $region23: #{tpu_custom_call.1} parent=15 // pred_region
          %s157 = sand.u32 %s69, 1
          %s158 = scalar_lea.sflag [#allocation6], %s157
          %s159 = sand.u32 %s69, 1
          %s160 = smul.addr %s159, 24
          %s161 = scalar_lea.vmem [#allocation5], %s160
          %s163 = ssub.s32 384, 384
          %164 = vsyncadd %s158, %s163
          %s165 = smul.addr %s24, 3
          %s166 = sadd.s32 %s25, %s165
          %s167 = smul.addr %s166, 128
          %s168 = scalar_lea.hbm %s1, %s167
          %s169 = sshll.u32 %s161, 4
          %s170 = int_to_ptr.vmem [resolvable:$true] %s169
          %175 = dma.hbm_to_vmem [thread:$0]  %s168, 384, %s170, %s158, 128, 128, 8
        $region24: #{tpu_custom_call.1} parent=15 // pred_fallthru
          _
      $region16: #{tpu_custom_call.1} parent=5 // pred_fallthru
        _
      %p176 = scmp.le.s32.totalorder 1, %s17
      %p177 = scmp.lt.s32.totalorder %s17, 3
      %p178 = pnand %p176, %p177
      %p179 = pneg %p178
      // Predicated region
      $region25: #{tpu_custom_call.1} parent=5 // pred_check
        _
      $region26: #{tpu_custom_call.1} parent=5 // pred_check_branch
        %181 = sbr.rel (%p178) target = $region28
      $region27: #{tpu_custom_call.1} parent=5 // pred_region
        %s182 = ssub.s32 %s17, 1
        %s183 = sand.u32 %s44, 1
        %s184 = scalar_lea.sflag [#allocation3], %s183
        %s185 = sand.u32 %s44, 1
        %s186 = smul.addr %s185, 24
        %s187 = scalar_lea.vmem [#allocation2], %s186
        // Predicated region
        $region29: #{tpu_custom_call.1} parent=27 // pred_check
          %p188 = pneg %p57
        $region30: #{tpu_custom_call.1} parent=27 // pred_check_branch
          %190 = sbr.rel (%p188) target = $region32
        $region31: #{tpu_custom_call.1} parent=27 // pred_region
          %191 = dma.done %s184, 384
        $region32: #{tpu_custom_call.1} parent=27 // pred_fallthru
          _
        %s192 = sand.u32 %s72, 1
        %s193 = scalar_lea.sflag [#allocation6], %s192
        %s194 = sand.u32 %s72, 1
        %s195 = smul.addr %s194, 24
        %s196 = scalar_lea.vmem [#allocation5], %s195
        // Predicated region
        $region33: #{tpu_custom_call.1} parent=27 // pred_check
          %p197 = pneg %p85
        $region34: #{tpu_custom_call.1} parent=27 // pred_check_branch
          %199 = sbr.rel (%p197) target = $region36
        $region35: #{tpu_custom_call.1} parent=27 // pred_region
          %200 = dma.done %s193, 384
        $region36: #{tpu_custom_call.1} parent=27 // pred_fallthru
          _
        %s201 = sand.u32 %s44, 1
        %s202 = scalar_lea.sflag [#allocation3], %s201
        %s203 = sand.u32 %s44, 1
        %s204 = smul.addr %s203, 24
        %s205 = scalar_lea.vmem [#allocation2], %s204
        %p206 = pneg %p57
        %p207 = pneg %p54
        %s208 = sand.u32 %s72, 1
        %s209 = scalar_lea.sflag [#allocation6], %s208
        %s210 = sand.u32 %s72, 1
        %s211 = smul.addr %s210, 24
        %s212 = scalar_lea.vmem [#allocation5], %s211
        %p213 = pneg %p85
        %p214 = pneg %p82
        %p215 = pneg %p113
        %p216 = pneg %p110
        %s217 = sand.u32 %s100, 1
        %s218 = scalar_lea.sflag [#allocation4], %s217
        %s219 = sand.u32 %s100, 1
        %s220 = smul.addr %s219, 8
        %s221 = scalar_lea.vmem [#allocation7], %s220
        %v222 = vld [vmem:[%s187] sm:$0xff]
        %v223 = vld [vmem:[%s196] sm:$0xff]
        %v224 = vsub.f32 %v222, %v223
        %v225 = vmul.f32 %v224, 0.25678822
        %s226 = scalar_lea.vmem %s187, 8 [#allocation2]
        %v227 = vld [vmem:[%s226] sm:$0xff]
        %s228 = scalar_lea.vmem %s196, 8 [#allocation5]
        %v229 = vld [vmem:[%s228] sm:$0xff]
        %v230 = vsub.f32 %v227, %v229
        %v231 = vmul.f32 %v230, 0.5041294
        %v232 = vadd.f32 %v225, %v231
        %s233 = scalar_lea.vmem %s187, 16 [#allocation2]
        %v234 = vld [vmem:[%s233] sm:$0xff]
        %s235 = scalar_lea.vmem %s196, 16 [#allocation5]
        %v236 = vld [vmem:[%s235] sm:$0xff]
        %v237 = vsub.f32 %v234, %v236
        %v238 = vmul.f32 %v237, 0.09790588
        %v239 = vadd.f32 %v232, %v238
        %v240 = vand.u32 2147483647, %v239
        %p241 = scmp.ne.s32.totalorder %s27, 0
        // Predicated region
        $region37: #{tpu_custom_call.1} parent=27 // pred_check
          %p242 = pneg %p241
        $region38: #{tpu_custom_call.1} parent=27 // pred_check_branch
          %244 = sbr.rel (%p242) target = $region40
        $region39: #{tpu_custom_call.1} parent=27 // pred_region
          %v245 = vadd.f32 %v240, 0.0
          %246 = vst [vmem:[%s221] sm:$0xff] %v245
        $region40: #{tpu_custom_call.1} parent=27 // pred_fallthru
          _
        %p247 = scmp.eq.s32.totalorder %s27, 0
        // Predicated region
        $region41: #{tpu_custom_call.1} parent=27 // pred_check
          %p248 = pneg %p247
        $region42: #{tpu_custom_call.1} parent=27 // pred_check_branch
          %250 = sbr.rel (%p248) target = $region44
        $region43: #{tpu_custom_call.1} parent=27 // pred_region
          %v251 = vlaneseq
          %v252 = vshrl.u32 %v251, 7
          %s253 = smul.u32 %s27, 8
          %v254 = vstv %s253
          %v255 = vadd.s32 %v254, %v252
          %vm256 = vcmp.lt.s32.totalorder %v255, 2
          %v257 = vsel %vm256, %v240, 0.0
          %v258 = vadd.f32 %v257, 0.0
          %259 = vst [vmem:[%s221] sm:$0xff] %v258
        $region44: #{tpu_custom_call.1} parent=27 // pred_fallthru
          _
        %s260 = sand.u32 %s100, 1
        %s261 = scalar_lea.sflag [#allocation4], %s260
        %s262 = sand.u32 %s100, 1
        %s263 = smul.addr %s262, 8
        %s264 = scalar_lea.vmem [#allocation7], %s263
        // Predicated region
        $region45: #{tpu_custom_call.1} parent=27 // pred_check
          %p265 = pneg %p110
        $region46: #{tpu_custom_call.1} parent=27 // pred_check_branch
          %267 = sbr.rel (%p265) target = $region48
        $region47: #{tpu_custom_call.1} parent=27 // pred_region
          %s269 = ssub.s32 128, 128
          %270 = vsyncadd %s261, %s269
          %s271 = sadd.s32 %s27, %s26
          %s272 = smul.addr %s271, 128
          %s273 = scalar_lea.hbm %s2, %s272
          %s275 = sshll.u32 %s264, 4
          %s276 = int_to_ptr.vmem [resolvable:$true] %s275
          %278 = dma.vmem_to_hbm [thread:$0]  %s276, 128, %s273, %s261
        $region48: #{tpu_custom_call.1} parent=27 // pred_fallthru
          _
      $region28: #{tpu_custom_call.1} parent=5 // pred_fallthru
        _
      %p279 = scmp.le.s32.totalorder 2, %s17
      // Predicated region
      $region49: #{tpu_custom_call.1} parent=5 // pred_check
        %p280 = pneg %p279
      $region50: #{tpu_custom_call.1} parent=5 // pred_check_branch
        %282 = sbr.rel (%p280) target = $region52
      $region51: #{tpu_custom_call.1} parent=5 // pred_region
        %s283 = ssub.s32 %s17, 2
        // Predicated region
        $region53: #{tpu_custom_call.1} parent=51 // pred_check
          %p284 = pneg %p116
        $region54: #{tpu_custom_call.1} parent=51 // pred_check_branch
          %286 = sbr.rel (%p284) target = $region56
        $region55: #{tpu_custom_call.1} parent=51 // pred_region
          %s287 = sand.u32 %s101, 1
          %s288 = scalar_lea.sflag [#allocation4], %s287
          %s289 = sand.u32 %s101, 1
          %s290 = smul.addr %s289, 8
          %s291 = scalar_lea.vmem [#allocation7], %s290
          %292 = dma.done %s288, 128
        $region56: #{tpu_custom_call.1} parent=51 // pred_fallthru
          _
      $region52: #{tpu_custom_call.1} parent=5 // pred_fallthru
        _
    $region6: #{tpu_custom_call.1} parent=1 // loop_footer
      %s21 = sadd.s32 1, %s17
    $region7: #{tpu_custom_call.1} parent=1 // loop_footer_branch
      %16 = sbr.rel target = $region3
    $region8: #{tpu_custom_call.1} parent=1 // loop_exit
      _
    %293 = vsyncpa [#allocation3], 1
    %s294 = scalar_lea.sflag [#allocation3], 1
    %295 = vsyncpa %s294, 1
    %296 = vsyncpa [#allocation6], 1
    %s297 = scalar_lea.sflag [#allocation6], 1
    %298 = vsyncpa %s297, 1
    %299 = vsyncpa [#allocation4], 1
    %s300 = scalar_lea.sflag [#allocation4], 1
    %301 = vsyncpa %s300, 1

</llo_original>
